<compile_context>
chip_gen: v7x
topology: tpu7x:2x2x1
jax: 0.10.0
libtpu: 0.0.40
codegen_flags: <defaults>
</compile_context>

<pallas_src>
import jax
import jax.numpy as jnp
from jax.experimental import pallas as pl
from jax.experimental.pallas import tpu as pltpu

_LANE = 128        # lane width (last-dim tile)
_SUBLANE = 16      # bf16 sublane packing on the second-to-last dim


def _round_up(x, m):
    return ((x + m - 1) // m) * m


def _mlp_kernel(x_ref, w1_ref, b1_ref, w2_ref, b2_ref, w3_ref, b3_ref, out_ref):
    # fc1 + ReLU: bf16 x bf16 operands, f32 MXU accumulation.
    h1 = jnp.dot(x_ref[...], w1_ref[...], preferred_element_type=jnp.float32)
    h1 = jnp.maximum(h1 + b1_ref[...], 0.0)                      # f32
    # fc2 + ReLU: keep the activation in f32 (MXU has large slack; better
    # parity with the f32 PyTorch forward).  Weights arrive as bf16 (half the
    # HBM bytes) and are upcast in VMEM.
    h2 = jnp.dot(h1, w2_ref[...].astype(jnp.float32),
                 preferred_element_type=jnp.float32)
    h2 = jnp.maximum(h2 + b2_ref[...], 0.0)                      # f32
    # fc3 (no activation)
    out = jnp.dot(h2, w3_ref[...].astype(jnp.float32),
                  preferred_element_type=jnp.float32)
    out_ref[...] = (out + b3_ref[...]).astype(out_ref.dtype)


def prepare_params(params):
    """One-time preparation of the weights for the kernel (hoisted out of the
    per-call path): pad the hidden feature dims to 128 lanes and cast weights
    to bf16.  Input dim (matmul K of layer 1) and action dim (output lanes)
    are deliberately left unpadded to shrink the state / output HBM streams.
    Zero padding of hidden dims is numerically exact (ReLU(0)=0, zero bias)."""
    in_dim, fc1 = params["w1"].shape
    fc2 = params["w2"].shape[1]
    act = params["w3"].shape[1]
    fc1_p = _round_up(fc1, _LANE)
    fc2_p = _round_up(fc2, _LANE)

    def pad2(a, rows, cols, dtype):
        a = a.astype(dtype)
        return jnp.pad(a, ((0, rows - a.shape[0]), (0, cols - a.shape[1])))

    return {
        "w1": pad2(params["w1"], in_dim, fc1_p, jnp.bfloat16),
        "b1": pad2(params["b1"], 1, fc1_p, jnp.float32),
        "w2": pad2(params["w2"], fc1_p, fc2_p, jnp.bfloat16),
        "b2": pad2(params["b2"], 1, fc2_p, jnp.float32),
        "w3": pad2(params["w3"], fc2_p, act, jnp.bfloat16),
        "b3": pad2(params["b3"], 1, act, jnp.float32),
    }


def dq_network_forward(state, prepared, *, block_b=None):
    """Forward pass of DQNetWork.

    state    : (B, input_size) float32
    prepared : output of prepare_params() (pre-padded bf16 weights, f32 biases)
    """
    B, in_dim = state.shape
    assert prepared["w1"].shape[0] == in_dim
    fc1_p = prepared["w1"].shape[1]
    fc2_p = prepared["w2"].shape[1]
    act = prepared["w3"].shape[1]

    # ---- batch tile selection ------------------------------------------------
    if block_b is None:
        b_aligned = _round_up(B, _SUBLANE)
        # <=1024 rows per step (HBM-roofline sweet spot), >=2 steps when the
        # batch allows (so v7x's two TensorCores both get work), rows split
        # evenly to avoid whole wasted tiles.
        n_steps = max(pl.cdiv(b_aligned, 1024),
                      2 if b_aligned >= 2 * _SUBLANE else 1)
        block_b = _round_up(pl.cdiv(b_aligned, n_steps), _SUBLANE)
    block_b = max(_SUBLANE, _round_up(block_b, _SUBLANE))
    b_pad = _round_up(B, block_b)

    # ---- per-call input prep: cast state to bf16, pad batch rows only --------
    x = state.astype(jnp.bfloat16)
    if b_pad != B:
        x = jnp.pad(x, ((0, b_pad - B), (0, 0)))

    grid = (b_pad // block_b,)

    # Weights/biases are tiny: every grid step sees the full tensor.
    full = lambda shape: pl.BlockSpec(shape, lambda i: (0,) * len(shape))

    flops = 2 * b_pad * (in_dim * fc1_p + fc1_p * fc2_p + fc2_p * act)
    bytes_accessed = (
        b_pad * in_dim * 2                                        # state (bf16)
        + (prepared["w1"].size + prepared["w2"].size + prepared["w3"].size) * 2
        + (prepared["b1"].size + prepared["b2"].size + prepared["b3"].size) * 4
        + b_pad * act * 4                                         # output (f32)
    )

    out_padded = pl.pallas_call(
        _mlp_kernel,
        out_shape=jax.ShapeDtypeStruct((b_pad, act), jnp.float32),
        grid_spec=pltpu.PrefetchScalarGridSpec(
            num_scalar_prefetch=0,
            grid=grid,
            in_specs=[
                # state tile: last dim == full array dim (unpadded K).
                pl.BlockSpec((block_b, in_dim), lambda i: (i, 0)),
                full((in_dim, fc1_p)),
                full((1, fc1_p)),
                full((fc1_p, fc2_p)),
                full((1, fc2_p)),
                full((fc2_p, act)),   # last dim == full array dim (action)
                full((1, act)),
            ],
            # output block last dim == full array dim -> no 128-lane padding,
            # 16x fewer write bytes than a padded f32 (b_pad, 128) stream.
            out_specs=pl.BlockSpec((block_b, act), lambda i: (i, 0)),
        ),
        compiler_params=pltpu.CompilerParams(
            dimension_semantics=("parallel",),
            # Well above the few MiB a 1024-row tile needs; at/below every
            # generation's scoped default (v5e raised from 16 MiB, v6e/v7x 32).
            vmem_limit_bytes=32 * 1024 * 1024,
        ),
        cost_estimate=pl.CostEstimate(
            flops=flops, transcendentals=0, bytes_accessed=bytes_accessed
        ),
    )(x, prepared["w1"], prepared["b1"], prepared["w2"], prepared["b2"],
      prepared["w3"], prepared["b3"])

    # Strip batch padding (padded rows carry ReLU(bias) garbage by design).
    return out_padded[:B]


def init_params(key, input_size, fc1_size, fc2_size, action_size):
    """Deterministic init mimicking nn.Linear default (uniform +-1/sqrt(fan_in)).
    Weights stored as (in, out) = PyTorch weight.T, in float32."""
    ks = jax.random.split(key, 6)

    def lin(kw, kb, fan_in, fan_out):
        bound = 1.0 / jnp.sqrt(float(fan_in))
        w = jax.random.uniform(kw, (fan_in, fan_out), jnp.float32, -bound, bound)
        b = jax.random.uniform(kb, (1, fan_out), jnp.float32, -bound, bound)
        return w, b

    w1, b1 = lin(ks[0], ks[1], input_size, fc1_size)
    w2, b2 = lin(ks[2], ks[3], fc1_size, fc2_size)
    w3, b3 = lin(ks[4], ks[5], fc2_size, action_size)
    return {"w1": w1, "b1": b1, "w2": w2, "b2": b2, "w3": w3, "b3": b3}


if __name__ == "__main__":
    # Small shapes consistent with the module's forward:
    # state: (batch, input_size); actions: (batch, action_size)
    batch, input_size, fc1_size, fc2_size, action_size = 8, 32, 64, 64, 8

    key = jax.random.PRNGKey(0)
    k_state, k_params = jax.random.split(key)
    state = jax.random.normal(k_state, (batch, input_size), jnp.float32)
    params = init_params(k_params, input_size, fc1_size, fc2_size, action_size)

    prepared = prepare_params(params)              # hoisted, done once
    fwd = jax.jit(dq_network_forward)

    actions = jax.block_until_ready(fwd(state, prepared))
    assert actions.shape == (batch, action_size)

    # Reference 1: matches the kernel's numerics (bf16-rounded state/weights,
    # f32 accumulation and f32 intermediates).
    def q(a):
        return a.astype(jnp.bfloat16).astype(jnp.float32)

    h1 = jnp.maximum(q(state) @ q(params["w1"]) + params["b1"], 0.0)
    h2 = jnp.maximum(h1 @ q(params["w2"]) + params["b2"], 0.0)
    ref_bf16 = h2 @ q(params["w3"]) + params["b3"]
    assert jnp.allclose(actions, ref_bf16, atol=2e-2, rtol=2e-2)

    # Reference 2: pure float32 PyTorch-equivalent forward (loose tolerance:
    # the kernel streams bf16 state/weights).
    h1 = jnp.maximum(state @ params["w1"] + params["b1"], 0.0)
    h2 = jnp.maximum(h1 @ params["w2"] + params["b2"], 0.0)
    ref_f32 = h2 @ params["w3"] + params["b3"]
    assert jnp.allclose(actions, ref_f32, atol=5e-2, rtol=5e-2)

    print("KERNEL_OK")
</pallas_src>

<mosaic_0001>
module attributes {stable_mosaic.version = 11 : i64} {
  func.func @_mlp_kernel(%arg0: i32, %arg1: memref<16x32xbf16, #tpu.memory_space<vmem>>, %arg2: memref<32x128xbf16, #tpu.memory_space<vmem>>, %arg3: memref<1x128xf32, #tpu.memory_space<vmem>>, %arg4: memref<128x128xbf16, #tpu.memory_space<vmem>>, %arg5: memref<1x128xf32, #tpu.memory_space<vmem>>, %arg6: memref<128x8xbf16, #tpu.memory_space<vmem>>, %arg7: memref<1x8xf32, #tpu.memory_space<vmem>>, %arg8: memref<16x8xf32, #tpu.memory_space<vmem>>) attributes {dimension_semantics = [#tpu.dimension_semantics<parallel>], iteration_bounds = array<i64: 1>, scalar_prefetch = 0 : i64, scratch_operands = 0 : i64, tpu.core_type = #tpu.core_type<tc>, window_params = [{transform_indices = @transform_0, window_bounds = array<i64: 16, 32>}, {pipeline_mode = #tpu.pipeline_mode<synchronous>, transform_indices = @transform_1, window_bounds = array<i64: 32, 128>}, {pipeline_mode = #tpu.pipeline_mode<synchronous>, transform_indices = @transform_2, window_bounds = array<i64: 1, 128>}, {pipeline_mode = #tpu.pipeline_mode<synchronous>, transform_indices = @transform_3, window_bounds = array<i64: 128, 128>}, {pipeline_mode = #tpu.pipeline_mode<synchronous>, transform_indices = @transform_4, window_bounds = array<i64: 1, 128>}, {pipeline_mode = #tpu.pipeline_mode<synchronous>, transform_indices = @transform_5, window_bounds = array<i64: 128, 8>}, {pipeline_mode = #tpu.pipeline_mode<synchronous>, transform_indices = @transform_6, window_bounds = array<i64: 1, 8>}, {transform_indices = @transform_7, window_bounds = array<i64: 16, 8>}]} {
    %c0 = arith.constant 0 : index
    %c0_0 = arith.constant 0 : index
    %0 = vector.load %arg1[%c0, %c0_0] : memref<16x32xbf16, #tpu.memory_space<vmem>>, vector<16x32xbf16>
    %c0_1 = arith.constant 0 : index
    %c0_2 = arith.constant 0 : index
    %1 = vector.load %arg2[%c0_1, %c0_2] : memref<32x128xbf16, #tpu.memory_space<vmem>>, vector<32x128xbf16>
    %cst = arith.constant dense<0.000000e+00> : vector<16x128xf32>
    %2 = tpu.matmul %0, %1, %cst {dimension_numbers = #tpu.dot_dimension_numbers<[1], [0], [0], [1], [0, 0, 1, 1], [], []>} : vector<16x32xbf16>, vector<32x128xbf16>, vector<16x128xf32> -> vector<16x128xf32>
    %c0_3 = arith.constant 0 : index
    %c0_4 = arith.constant 0 : index
    %3 = vector.load %arg3[%c0_3, %c0_4] : memref<1x128xf32, #tpu.memory_space<vmem>>, vector<1x128xf32>
    %4 = vector.broadcast %3 : vector<1x128xf32> to vector<16x128xf32>
    %5 = arith.addf %2, %4 : vector<16x128xf32>
    %cst_5 = arith.constant 0.000000e+00 : f32
    %6 = vector.broadcast %cst_5 : f32 to vector<16x128xf32>
    %7 = arith.maximumf %5, %6 : vector<16x128xf32>
    %c0_6 = arith.constant 0 : index
    %c0_7 = arith.constant 0 : index
    %8 = vector.load %arg4[%c0_6, %c0_7] : memref<128x128xbf16, #tpu.memory_space<vmem>>, vector<128x128xbf16>
    %9 = arith.extf %8 : vector<128x128xbf16> to vector<128x128xf32>
    %cst_8 = arith.constant dense<0.000000e+00> : vector<16x128xf32>
    %10 = tpu.matmul %7, %9, %cst_8 {dimension_numbers = #tpu.dot_dimension_numbers<[1], [0], [0], [1], [0, 0, 1, 1], [], []>} : vector<16x128xf32>, vector<128x128xf32>, vector<16x128xf32> -> vector<16x128xf32>
    %c0_9 = arith.constant 0 : index
    %c0_10 = arith.constant 0 : index
    %11 = vector.load %arg5[%c0_9, %c0_10] : memref<1x128xf32, #tpu.memory_space<vmem>>, vector<1x128xf32>
    %12 = vector.broadcast %11 : vector<1x128xf32> to vector<16x128xf32>
    %13 = arith.addf %10, %12 : vector<16x128xf32>
    %cst_11 = arith.constant 0.000000e+00 : f32
    %14 = vector.broadcast %cst_11 : f32 to vector<16x128xf32>
    %15 = arith.maximumf %13, %14 : vector<16x128xf32>
    %c0_12 = arith.constant 0 : index
    %c0_13 = arith.constant 0 : index
    %16 = vector.load %arg6[%c0_12, %c0_13] : memref<128x8xbf16, #tpu.memory_space<vmem>>, vector<128x8xbf16>
    %17 = arith.extf %16 : vector<128x8xbf16> to vector<128x8xf32>
    %cst_14 = arith.constant dense<0.000000e+00> : vector<16x8xf32>
    %18 = tpu.matmul %15, %17, %cst_14 {dimension_numbers = #tpu.dot_dimension_numbers<[1], [0], [0], [1], [0, 0, 1, 1], [], []>} : vector<16x128xf32>, vector<128x8xf32>, vector<16x8xf32> -> vector<16x8xf32>
    %c0_15 = arith.constant 0 : index
    %c0_16 = arith.constant 0 : index
    %19 = vector.load %arg7[%c0_15, %c0_16] : memref<1x8xf32, #tpu.memory_space<vmem>>, vector<1x8xf32>
    %20 = vector.broadcast %19 : vector<1x8xf32> to vector<16x8xf32>
    %21 = arith.addf %18, %20 : vector<16x8xf32>
    %c0_17 = arith.constant 0 : index
    %c0_18 = arith.constant 0 : index
    %22 = vector.load %arg8[%c0_17, %c0_18] : memref<16x8xf32, #tpu.memory_space<vmem>>, vector<16x8xf32>
    tpu.vector_store %arg8[%c0_17, %c0_18], %21 {strides = array<i32>} : memref<16x8xf32, #tpu.memory_space<vmem>>, vector<16x8xf32>,
    return
  }
  func.func @transform_0(%arg0: i32) -> (i32, i32) {
    %c0_i32 = arith.constant 0 : i32
    %c0_i32_0 = arith.constant 0 : i32
    return %arg0, %c0_i32 : i32, i32
  }
  func.func @transform_1(%arg0: i32) -> (i32, i32) {
    %c0_i32 = arith.constant 0 : i32
    %c0_i32_0 = arith.constant 0 : i32
    %c0_i32_1 = arith.constant 0 : i32
    return %c0_i32, %c0_i32_0 : i32, i32
  }
  func.func @transform_2(%arg0: i32) -> (i32, i32) {
    %c0_i32 = arith.constant 0 : i32
    %c0_i32_0 = arith.constant 0 : i32
    %c0_i32_1 = arith.constant 0 : i32
    return %c0_i32, %c0_i32_0 : i32, i32
  }
  func.func @transform_3(%arg0: i32) -> (i32, i32) {
    %c0_i32 = arith.constant 0 : i32
    %c0_i32_0 = arith.constant 0 : i32
    %c0_i32_1 = arith.constant 0 : i32
    return %c0_i32, %c0_i32_0 : i32, i32
  }
  func.func @transform_4(%arg0: i32) -> (i32, i32) {
    %c0_i32 = arith.constant 0 : i32
    %c0_i32_0 = arith.constant 0 : i32
    %c0_i32_1 = arith.constant 0 : i32
    return %c0_i32, %c0_i32_0 : i32, i32
  }
  func.func @transform_5(%arg0: i32) -> (i32, i32) {
    %c0_i32 = arith.constant 0 : i32
    %c0_i32_0 = arith.constant 0 : i32
    %c0_i32_1 = arith.constant 0 : i32
    return %c0_i32, %c0_i32_0 : i32, i32
  }
  func.func @transform_6(%arg0: i32) -> (i32, i32) {
    %c0_i32 = arith.constant 0 : i32
    %c0_i32_0 = arith.constant 0 : i32
    %c0_i32_1 = arith.constant 0 : i32
    return %c0_i32, %c0_i32_0 : i32, i32
  }
  func.func @transform_7(%arg0: i32) -> (i32, i32) {
    %c0_i32 = arith.constant 0 : i32
    %c0_i32_0 = arith.constant 0 : i32
    return %arg0, %c0_i32 : i32, i32
  }
}

</mosaic_0001>

<llo_original>
// kernel: dq_network_forward.1
$region0: #{dq_network_forward.1}
  #allocation0 [shape = 'u32[]', space=smem, size = 0x4, offset = 0x4, fixed_abs, tag = 'smem constant byte address 0x4 - core index']
  #allocation1 [shape = 'u32[144,128]{1,0:T(1,128)}', space=vmem, size = 0x12000, scoped, tag = 'internal scratch']
  %s0 = inlined_call_operand.vmem [shape: bf16[16,32], index: 0, kind: input, shape index: {}]
  %s1 = inlined_call_operand.vmem [shape: bf16[32,128], index: 1, kind: input, shape index: {}]
  %s2 = inlined_call_operand.vmem [shape: f32[1,128], index: 2, kind: input, shape index: {}]
  %s3 = inlined_call_operand.vmem [shape: bf16[128,128], index: 3, kind: input, shape index: {}]
  %s4 = inlined_call_operand.vmem [shape: f32[1,128], index: 4, kind: input, shape index: {}]
  %s5 = inlined_call_operand.vmem [shape: bf16[128,8], index: 5, kind: input, shape index: {}]
  %s6 = inlined_call_operand.vmem [shape: f32[1,8], index: 6, kind: input, shape index: {}]
  %s7 = inlined_call_operand.vmem [shape: f32[16,8], index: 7, kind: output, shape index: {}]
  %s8 = sld [smem:[#allocation0]]
  $region38: #{dq_network_forward.1} parent=0
    _
  %s10 = ssub.s32 1, %s8
  %s11 = scalar_select 0, %s10, %s8
  // Predicated region
  $region2: #{dq_network_forward.1} parent=0 // pred_check
    _
  $region3: #{dq_network_forward.1} parent=0 // pred_check_branch
    %13 = sbr.rel (0) target = $region5
  $region4: #{dq_network_forward.1} parent=0 // pred_region
    _
  $region5: #{dq_network_forward.1} parent=0 // pred_fallthru
    _
  // Predicated region
  $region6: #{dq_network_forward.1} parent=0 // pred_check
    _
  $region7: #{dq_network_forward.1} parent=0 // pred_check_branch
    %15 = sbr.rel (0) target = $region9
  $region8: #{dq_network_forward.1} parent=0 // pred_region
    _
  $region9: #{dq_network_forward.1} parent=0 // pred_fallthru
    _
  // Predicated region
  $region10: #{dq_network_forward.1} parent=0 // pred_check
    _
  $region11: #{dq_network_forward.1} parent=0 // pred_check_branch
    %17 = sbr.rel (0) target = $region13
  $region12: #{dq_network_forward.1} parent=0 // pred_region
    _
  $region13: #{dq_network_forward.1} parent=0 // pred_fallthru
    _
  // Predicated region
  $region14: #{dq_network_forward.1} parent=0 // pred_check
    _
  $region15: #{dq_network_forward.1} parent=0 // pred_check_branch
    %19 = sbr.rel (0) target = $region17
  $region16: #{dq_network_forward.1} parent=0 // pred_region
    _
  $region17: #{dq_network_forward.1} parent=0 // pred_fallthru
    _
  // Predicated region
  $region18: #{dq_network_forward.1} parent=0 // pred_check
    _
  $region19: #{dq_network_forward.1} parent=0 // pred_check_branch
    %21 = sbr.rel (0) target = $region21
  $region20: #{dq_network_forward.1} parent=0 // pred_region
    _
  $region21: #{dq_network_forward.1} parent=0 // pred_fallthru
    _
  // Predicated region
  $region22: #{dq_network_forward.1} parent=0 // pred_check
    _
  $region23: #{dq_network_forward.1} parent=0 // pred_check_branch
    %23 = sbr.rel (0) target = $region25
  $region24: #{dq_network_forward.1} parent=0 // pred_region
    _
  $region25: #{dq_network_forward.1} parent=0 // pred_fallthru
    _
  // Predicated region
  $region26: #{dq_network_forward.1} parent=0 // pred_check
    _
  $region27: #{dq_network_forward.1} parent=0 // pred_check_branch
    %25 = sbr.rel (0) target = $region29
  $region28: #{dq_network_forward.1} parent=0 // pred_region
    _
  $region29: #{dq_network_forward.1} parent=0 // pred_fallthru
    _
  %v27 = vld [vmem:[%s0] sm:$0xf]
  %v28 = vld [vmem:[%s0 + $0x4] sm:$0xf]
  %v29 = vld [vmem:[%s1] sm:$0xf]
  %v30 = vld [vmem:[%s1 + $0x4] sm:$0xf]
  %v31 = vld [vmem:[%s1 + $0x8] sm:$0xf]
  %v32 = vld [vmem:[%s1 + $0xc] sm:$0xf]
  %v33 = vld [vmem:[%s2] sm:$0x1]
  %v35 = vlaneseq
  %v36 = vshrl.u32 %v35, 7
  %v37 = vsub.s32 0, %v36
  %v38 = vrot.slane %v33, %v37
  %v42 = vunpack.c.l.b16 %v27
  %v43 = vunpack.c.l.b16 %v28
  %v44 = vpack.c.b16 %v43, %v42
  %v49 = vunpack.c.l.b16 %v29
  %v50 = vunpack.c.l.b16 %v30
  %v51 = vunpack.c.l.b16 %v31
  %v52 = vunpack.c.l.b16 %v32
  %v53 = vpack.c.b16 %v50, %v49
  %v54 = vpack.c.b16 %v52, %v51
  %vm57 = vcmask 261120
  %v59 = vsel %vm57, %v44, 0
  %61 = vmatprep.subr.bf16.mxu0 0
  %62 = vmatpush1.bf16.msra.mxu0 %v53
  %63 = vmatprep.subr.bf16.mxu0 0
  %64 = vmatpush1.bf16.msra.mxu0 %v54
  %65 = vmatprep.subr.bf16.mxu0 0
  %66 = vmatpush1.bf16.msra.mxu0 0
  %67 = vmatprep.subr.bf16.mxu0 0
  %68 = vmatpush1.bf16.msra.mxu0 0
  %69 = vmatprep.subr.bf16.mxu0 0
  %70 = vmatpush1.bf16.msra.mxu0 0
  %71 = vmatprep.subr.bf16.mxu0 0
  %72 = vmatpush1.bf16.msra.mxu0 0
  %73 = vmatprep.subr.bf16.mxu0 0
  %74 = vmatpush1.bf16.msra.mxu0 0
  %75 = vmatprep.subr.bf16.mxu0 0
  %76 = vmatpush1.bf16.msra.mxu0 0
  %77 = vmatprep.subr.bf16.mxu0 0
  %78 = vmatpush1.bf16.msra.mxu0 0
  %79 = vmatprep.subr.bf16.mxu0 0
  %80 = vmatpush1.bf16.msra.mxu0 0
  %81 = vmatprep.subr.bf16.mxu0 0
  %82 = vmatpush1.bf16.msra.mxu0 0
  %83 = vmatprep.subr.bf16.mxu0 0
  %84 = vmatpush1.bf16.msra.mxu0 0
  %85 = vmatprep.subr.bf16.mxu0 0
  %86 = vmatpush1.bf16.msra.mxu0 0
  %87 = vmatprep.subr.bf16.mxu0 0
  %88 = vmatpush1.bf16.msra.mxu0 0
  %89 = vmatprep.subr.bf16.mxu0 0
  %90 = vmatpush1.bf16.msra.mxu0 0
  %91 = vmatprep.subr.bf16.mxu0 0
  %92 = vmatpush1.bf16.msra.mxu0 0
  %93 = vmatprep.mubr.bf16.mxu0 0
  %94 = vmatmul.mubr.bf16.gmra.mrb[0].mxu0 %v59
  %v95 = vpop.f32.mrb[0].mxu0
  %v96 = vadd.f32 %v38, %v95
  %v97 = vpop.f32.mrb[0].mxu0
  %v98 = vpop.f32.mrb[0].mxu0
  %v99 = vadd.f32 %v38, %v98
  %v100 = vpop.f32.mrb[0].mxu0
  %101 = vdwg.mxu0
  %v102 = vmax.f32 %v96, 0.0
  %v103 = vmax.f32 %v99, 0.0
  %v104 = vld [vmem:[%s3] sm:$0xf]
  %v105 = vld [vmem:[%s3 + $0x4] sm:$0xf]
  %v106 = vld [vmem:[%s3 + $0x8] sm:$0xf]
  %v107 = vld [vmem:[%s3 + $0xc] sm:$0xf]
  %v108 = vld [vmem:[%s3 + $0x10] sm:$0xf]
  %v109 = vld [vmem:[%s3 + $0x14] sm:$0xf]
  %v110 = vld [vmem:[%s3 + $0x18] sm:$0xf]
  %v111 = vld [vmem:[%s3 + $0x1c] sm:$0xf]
  %v112 = vld [vmem:[%s3 + $0x20] sm:$0xf]
  %v113 = vld [vmem:[%s3 + $0x24] sm:$0xf]
  %v114 = vld [vmem:[%s3 + $0x28] sm:$0xf]
  %v115 = vld [vmem:[%s3 + $0x2c] sm:$0xf]
  %v116 = vld [vmem:[%s3 + $0x30] sm:$0xf]
  %v117 = vld [vmem:[%s3 + $0x34] sm:$0xf]
  %v118 = vld [vmem:[%s3 + $0x38] sm:$0xf]
  %v119 = vld [vmem:[%s3 + $0x3c] sm:$0xf]
  %v120 = vunpack.c.l.bf16 %v104
  %v121 = vunpack.c.l.bf16 %v105
  %v122 = vunpack.c.l.bf16 %v106
  %v123 = vunpack.c.l.bf16 %v107
  %v124 = vunpack.c.l.bf16 %v108
  %v125 = vunpack.c.l.bf16 %v109
  %v126 = vunpack.c.l.bf16 %v110
  %v127 = vunpack.c.l.bf16 %v111
  %v128 = vunpack.c.l.bf16 %v112
  %v129 = vunpack.c.l.bf16 %v113
  %v130 = vunpack.c.l.bf16 %v114
  %v131 = vunpack.c.l.bf16 %v115
  %v132 = vunpack.c.l.bf16 %v116
  %v133 = vunpack.c.l.bf16 %v117
  %v134 = vunpack.c.l.bf16 %v118
  %v135 = vunpack.c.l.bf16 %v119
  %v136 = vld [vmem:[%s4] sm:$0x1]
  %v138 = vlaneseq
  %v139 = vshrl.u32 %v138, 7
  %v140 = vsub.s32 0, %v139
  %v141 = vrot.slane %v136, %v140
  %143 = vmatprep.subr.mxu0 0.0
  %144 = vmatpush1.msra.mxu0 %v120
  %145 = vmatprep.subr.mxu0 0.0
  %146 = vmatpush1.msra.mxu0 %v121
  %147 = vmatprep.subr.mxu0 0.0
  %148 = vmatpush1.msra.mxu0 %v122
  %149 = vmatprep.subr.mxu0 0.0
  %150 = vmatpush1.msra.mxu0 %v123
  %151 = vmatprep.subr.mxu0 0.0
  %152 = vmatpush1.msra.mxu0 %v124
  %153 = vmatprep.subr.mxu0 0.0
  %154 = vmatpush1.msra.mxu0 %v125
  %155 = vmatprep.subr.mxu0 0.0
  %156 = vmatpush1.msra.mxu0 %v126
  %157 = vmatprep.subr.mxu0 0.0
  %158 = vmatpush1.msra.mxu0 %v127
  %159 = vmatprep.subr.mxu0 0.0
  %160 = vmatpush1.msra.mxu0 %v128
  %161 = vmatprep.subr.mxu0 0.0
  %162 = vmatpush1.msra.mxu0 %v129
  %163 = vmatprep.subr.mxu0 0.0
  %164 = vmatpush1.msra.mxu0 %v130
  %165 = vmatprep.subr.mxu0 0.0
  %166 = vmatpush1.msra.mxu0 %v131
  %167 = vmatprep.subr.mxu0 0.0
  %168 = vmatpush1.msra.mxu0 %v132
  %169 = vmatprep.subr.mxu0 0.0
  %170 = vmatpush1.msra.mxu0 %v133
  %171 = vmatprep.subr.mxu0 0.0
  %172 = vmatpush1.msra.mxu0 %v134
  %173 = vmatprep.subr.mxu0 0.0
  %174 = vmatpush1.msra.mxu0 %v135
  %175 = vmatprep.subr.mxu0 0.0
  %176 = vmatpush1.msra.mxu0 0.0
  %177 = vmatprep.subr.mxu0 0.0
  %178 = vmatpush1.msra.mxu0 0.0
  %179 = vmatprep.subr.mxu0 0.0
  %180 = vmatpush1.msra.mxu0 0.0
  %181 = vmatprep.subr.mxu0 0.0
  %182 = vmatpush1.msra.mxu0 0.0
  %183 = vmatprep.subr.mxu0 0.0
  %184 = vmatpush1.msra.mxu0 0.0
  %185 = vmatprep.subr.mxu0 0.0
  %186 = vmatpush1.msra.mxu0 0.0
  %187 = vmatprep.subr.mxu0 0.0
  %188 = vmatpush1.msra.mxu0 0.0
  %189 = vmatprep.subr.mxu0 0.0
  %190 = vmatpush1.msra.mxu0 0.0
  %191 = vmatprep.subr.mxu0 0.0
  %192 = vmatpush1.msra.mxu0 0.0
  %193 = vmatprep.subr.mxu0 0.0
  %194 = vmatpush1.msra.mxu0 0.0
  %195 = vmatprep.subr.mxu0 0.0
  %196 = vmatpush1.msra.mxu0 0.0
  %197 = vmatprep.subr.mxu0 0.0
  %198 = vmatpush1.msra.mxu0 0.0
  %199 = vmatprep.subr.mxu0 0.0
  %200 = vmatpush1.msra.mxu0 0.0
  %201 = vmatprep.subr.mxu0 0.0
  %202 = vmatpush1.msra.mxu0 0.0
  %203 = vmatprep.subr.mxu0 0.0
  %204 = vmatpush1.msra.mxu0 0.0
  %205 = vmatprep.subr.mxu0 0.0
  %206 = vmatpush1.msra.mxu0 0.0
  %207 = vmatprep.mubr.f32.mxu0 0.0
  %208 = vmatmul.mubr.f32.gmra.mrb[0].mxu0 %v102
  %v209 = vpop.f32.mrb[0].mxu0
  %v210 = vadd.f32 %v141, %v209
  %v211 = vpop.f32.mrb[0].mxu0
  %212 = vmatprep.mubr.f32.mxu0 0.0
  %213 = vmatmul.mubr.f32.gmra.mrb[0].mxu0 %v103
  %v214 = vpop.f32.mrb[0].mxu0
  %v215 = vadd.f32 %v141, %v214
  %v216 = vpop.f32.mrb[0].mxu0
  %217 = vdwg.mxu0
  %v218 = vmax.f32 %v210, 0.0
  %v219 = vmax.f32 %v215, 0.0
  %v220 = vld [vmem:[%s5] sm:$0xf]
  %v221 = vld [vmem:[%s5 + $0x4] sm:$0xf]
  %v222 = vld [vmem:[%s5 + $0x8] sm:$0xf]
  %v223 = vld [vmem:[%s5 + $0xc] sm:$0xf]
  %v224 = vld [vmem:[%s5 + $0x10] sm:$0xf]
  %v225 = vld [vmem:[%s5 + $0x14] sm:$0xf]
  %v226 = vld [vmem:[%s5 + $0x18] sm:$0xf]
  %v227 = vld [vmem:[%s5 + $0x1c] sm:$0xf]
  %v228 = vld [vmem:[%s5 + $0x20] sm:$0xf]
  %v229 = vld [vmem:[%s5 + $0x24] sm:$0xf]
  %v230 = vld [vmem:[%s5 + $0x28] sm:$0xf]
  %v231 = vld [vmem:[%s5 + $0x2c] sm:$0xf]
  %v232 = vld [vmem:[%s5 + $0x30] sm:$0xf]
  %v233 = vld [vmem:[%s5 + $0x34] sm:$0xf]
  %v234 = vld [vmem:[%s5 + $0x38] sm:$0xf]
  %v235 = vld [vmem:[%s5 + $0x3c] sm:$0xf]
  %v236 = vunpack.c.l.bf16 %v220
  %v237 = vunpack.c.l.bf16 %v221
  %v238 = vunpack.c.l.bf16 %v222
  %v239 = vunpack.c.l.bf16 %v223
  %v240 = vunpack.c.l.bf16 %v224
  %v241 = vunpack.c.l.bf16 %v225
  %v242 = vunpack.c.l.bf16 %v226
  %v243 = vunpack.c.l.bf16 %v227
  %v244 = vunpack.c.l.bf16 %v228
  %v245 = vunpack.c.l.bf16 %v229
  %v246 = vunpack.c.l.bf16 %v230
  %v247 = vunpack.c.l.bf16 %v231
  %v248 = vunpack.c.l.bf16 %v232
  %v249 = vunpack.c.l.bf16 %v233
  %v250 = vunpack.c.l.bf16 %v234
  %v251 = vunpack.c.l.bf16 %v235
  %v252 = vld [vmem:[%s6] sm:$0x1]
  %v254 = vlaneseq
  %v255 = vshrl.u32 %v254, 7
  %v256 = vsub.s32 0, %v255
  %v257 = vrot.slane %v252, %v256
  %259 = vmatprep.subr.mxu0 0.0
  %260 = vmatpush1.msra.mxu0 %v236
  %261 = vmatprep.subr.mxu0 0.0
  %262 = vmatpush1.msra.mxu0 %v237
  %263 = vmatprep.subr.mxu0 0.0
  %264 = vmatpush1.msra.mxu0 %v238
  %265 = vmatprep.subr.mxu0 0.0
  %266 = vmatpush1.msra.mxu0 %v239
  %267 = vmatprep.subr.mxu0 0.0
  %268 = vmatpush1.msra.mxu0 %v240
  %269 = vmatprep.subr.mxu0 0.0
  %270 = vmatpush1.msra.mxu0 %v241
  %271 = vmatprep.subr.mxu0 0.0
  %272 = vmatpush1.msra.mxu0 %v242
  %273 = vmatprep.subr.mxu0 0.0
  %274 = vmatpush1.msra.mxu0 %v243
  %275 = vmatprep.subr.mxu0 0.0
  %276 = vmatpush1.msra.mxu0 %v244
  %277 = vmatprep.subr.mxu0 0.0
  %278 = vmatpush1.msra.mxu0 %v245
  %279 = vmatprep.subr.mxu0 0.0
  %280 = vmatpush1.msra.mxu0 %v246
  %281 = vmatprep.subr.mxu0 0.0
  %282 = vmatpush1.msra.mxu0 %v247
  %283 = vmatprep.subr.mxu0 0.0
  %284 = vmatpush1.msra.mxu0 %v248
  %285 = vmatprep.subr.mxu0 0.0
  %286 = vmatpush1.msra.mxu0 %v249
  %287 = vmatprep.subr.mxu0 0.0
  %288 = vmatpush1.msra.mxu0 %v250
  %289 = vmatprep.subr.mxu0 0.0
  %290 = vmatpush1.msra.mxu0 %v251
  %291 = vmatprep.subr.mxu0 0.0
  %292 = vmatpush1.msra.mxu0 0.0
  %293 = vmatprep.subr.mxu0 0.0
  %294 = vmatpush1.msra.mxu0 0.0
  %295 = vmatprep.subr.mxu0 0.0
  %296 = vmatpush1.msra.mxu0 0.0
  %297 = vmatprep.subr.mxu0 0.0
  %298 = vmatpush1.msra.mxu0 0.0
  %299 = vmatprep.subr.mxu0 0.0
  %300 = vmatpush1.msra.mxu0 0.0
  %301 = vmatprep.subr.mxu0 0.0
  %302 = vmatpush1.msra.mxu0 0.0
  %303 = vmatprep.subr.mxu0 0.0
  %304 = vmatpush1.msra.mxu0 0.0
  %305 = vmatprep.subr.mxu0 0.0
  %306 = vmatpush1.msra.mxu0 0.0
  %307 = vmatprep.subr.mxu0 0.0
  %308 = vmatpush1.msra.mxu0 0.0
  %309 = vmatprep.subr.mxu0 0.0
  %310 = vmatpush1.msra.mxu0 0.0
  %311 = vmatprep.subr.mxu0 0.0
  %312 = vmatpush1.msra.mxu0 0.0
  %313 = vmatprep.subr.mxu0 0.0
  %314 = vmatpush1.msra.mxu0 0.0
  %315 = vmatprep.subr.mxu0 0.0
  %316 = vmatpush1.msra.mxu0 0.0
  %317 = vmatprep.subr.mxu0 0.0
  %318 = vmatpush1.msra.mxu0 0.0
  %319 = vmatprep.subr.mxu0 0.0
  %320 = vmatpush1.msra.mxu0 0.0
  %321 = vmatprep.subr.mxu0 0.0
  %322 = vmatpush1.msra.mxu0 0.0
  %323 = vmatprep.mubr.f32.mxu0 0.0
  %324 = vmatmul.mubr.f32.gmra.mrb[0].mxu0 %v218
  %v325 = vpop.f32.mrb[0].mxu0
  %v326 = vadd.f32 %v257, %v325
  %v327 = vpop.f32.mrb[0].mxu0
  %328 = vmatprep.mubr.f32.mxu0 0.0
  %329 = vmatmul.mubr.f32.gmra.mrb[0].mxu0 %v219
  %v330 = vpop.f32.mrb[0].mxu0
  %v331 = vadd.f32 %v257, %v330
  %v332 = vpop.f32.mrb[0].mxu0
  %333 = vdwg.mxu0
  %vm334 = vcmask 64512
  %335 = vst.msk [vmem:[%s7] sm:$0xff] %vm334, %v326
  %336 = vst.msk [vmem:[%s7 + $0x8] sm:$0xff] %vm334, %v331
  // Predicated region
  $region30: #{dq_network_forward.1} parent=0 // pred_check
    _
  $region31: #{dq_network_forward.1} parent=0 // pred_check_branch
    %338 = sbr.rel (0) target = $region33
  $region32: #{dq_network_forward.1} parent=0 // pred_region
    _
  $region33: #{dq_network_forward.1} parent=0 // pred_fallthru
    _
  // Predicated region
  $region34: #{dq_network_forward.1} parent=0 // pred_check
    _
  $region35: #{dq_network_forward.1} parent=0 // pred_check_branch
    %340 = sbr.rel (0) target = $region37
  $region36: #{dq_network_forward.1} parent=0 // pred_region
    _
  $region37: #{dq_network_forward.1} parent=0 // pred_fallthru
    _

</llo_original>
